<compile_context>
chip_gen: v6e
topology: v6e:2x2x1
jax: 0.10.0
libtpu: 0.0.40
codegen_flags: <defaults>
</compile_context>

<pallas_src>
import functools

import jax
import jax.numpy as jnp
from jax.experimental import pallas as pl
from jax.experimental.pallas import tpu as pltpu


def _round_up(n, m):
    return ((n + m - 1) // m) * m


def gcn_kernel(x_ref, adj_ref, w1_ref, b1_ref, w2_ref, b2_ref, out_ref, y_ref):
    # Compute y = relu(x @ W1 + b1) @ W2 + b2 once; it stays resident in the VMEM
    # scratch across all row tiles of the grid (grid axis is "arbitrary").
    @pl.when(pl.program_id(0) == 0)
    def _():
        h = jnp.dot(x_ref[...], w1_ref[...], preferred_element_type=jnp.float32)
        h = jnp.maximum(h + b1_ref[...], 0.0)
        # TODO(synk): dropout is identity (eval-mode semantics); training-mode
        # dropout would need pltpu.prng_seed + pltpu.stateful_bernoulli + a seed arg.
        y = jnp.dot(h.astype(w2_ref.dtype), w2_ref[...],
                    preferred_element_type=jnp.float32) + b2_ref[...]
        y_ref[...] = y.astype(y_ref.dtype)

    # Graph propagation for this row tile: adj_tile @ y  (lane-dense f32 store).
    out_ref[...] = jnp.dot(adj_ref[...], y_ref[...],
                           preferred_element_type=jnp.float32).astype(out_ref.dtype)


@functools.partial(jax.jit, static_argnames=("tile_m",))
def gcn_forward(x, adj, w1, b1, w2, b2, *, tile_m=256):
    """x: [N, F_in], adj: [N, N], w1: [F_in, F_hid], b1: [F_hid],
    w2: [F_hid, F_out], b2: [F_out]  ->  [N, F_out] (float32)."""
    n, f_in = x.shape
    f_hid = w1.shape[1]
    f_out = w2.shape[1]

    # Lane-dense (128) padding of feature dims, bf16-friendly (16-row) padding of N.
    f_in_p = _round_up(f_in, 128)
    f_hid_p = _round_up(f_hid, 128)
    f_out_p = _round_up(f_out, 128)
    tile_m = min(tile_m, _round_up(n, 16))
    n_p = _round_up(n, tile_m)

    pad2 = lambda a, r, c: jnp.pad(a, ((0, r - a.shape[0]), (0, c - a.shape[1])))

    x_p = pad2(x, n_p, f_in_p).astype(jnp.bfloat16)
    adj_p = pad2(adj, n_p, n_p).astype(jnp.bfloat16)
    w1_p = pad2(w1, f_in_p, f_hid_p).astype(jnp.bfloat16)
    w2_p = pad2(w2, f_hid_p, f_out_p).astype(jnp.bfloat16)
    b1_p = pad2(b1.reshape(1, -1), 1, f_hid_p).astype(jnp.float32)
    b2_p = pad2(b2.reshape(1, -1), 1, f_out_p).astype(jnp.float32)

    grid = (n_p // tile_m,)
    full = lambda shape: pl.BlockSpec(shape, lambda i: (0,) * len(shape))

    # Rough VMEM budget (double-buffered adj/out tiles + resident operands + y
    # scratch) so moderate-N problems don't trip the 16/32 MiB default scoped limit;
    # capped at 64 MiB to stay within v7x physical VMEM.
    needed = (2 * tile_m * n_p * 2            # adj row tile, double buffered (bf16)
              + 2 * tile_m * f_out_p * 4      # out tile, double buffered (f32)
              + n_p * f_in_p * 2              # x (resident, bf16)
              + f_in_p * f_hid_p * 2          # W1
              + f_hid_p * f_out_p * 2         # W2
              + (f_hid_p + f_out_p) * 4       # biases (f32)
              + n_p * f_out_p * 2)            # y scratch (bf16)
    vmem_limit = int(min(64 * 2**20, max(32 * 2**20, needed * 3 // 2)))

    out_p = pl.pallas_call(
        gcn_kernel,
        out_shape=jax.ShapeDtypeStruct((n_p, f_out_p), jnp.float32),
        grid_spec=pltpu.PrefetchScalarGridSpec(
            num_scalar_prefetch=0,
            grid=grid,
            in_specs=[
                full((n_p, f_in_p)),                               # x  (resident)
                pl.BlockSpec((tile_m, n_p), lambda i: (i, 0)),     # adj row tile
                full((f_in_p, f_hid_p)),                           # W1 (resident)
                full((1, f_hid_p)),                                # b1
                full((f_hid_p, f_out_p)),                          # W2 (resident)
                full((1, f_out_p)),                                # b2
            ],
            out_specs=pl.BlockSpec((tile_m, f_out_p), lambda i: (i, 0)),
            scratch_shapes=[pltpu.VMEM((n_p, f_out_p), jnp.bfloat16)],  # y
        ),
        compiler_params=pltpu.CompilerParams(
            # "arbitrary": y scratch is written only at grid step 0 and reused, so
            # the row-tile loop must run sequentially on one core.
            dimension_semantics=("arbitrary",),
            vmem_limit_bytes=vmem_limit,
        ),
    )(x_p, adj_p, w1_p, b1_p, w2_p, b2_p)

    return out_p[:n, :f_out]


def gcn_reference(x, adj, w1, b1, w2, b2):
    h = jnp.maximum(x @ w1 + b1, 0.0)
    return adj @ (h @ w2 + b2)


if __name__ == "__main__":
    # Small shapes implied by the module: N nodes, input_dim, hidden_dim, output_dim.
    # N=40 with tile_m=16 exercises the multi-row-tile grid and padded rows.
    N, input_dim, hidden_dim, output_dim = 40, 16, 32, 8

    key = jax.random.PRNGKey(0)
    kx, kadj, kw1, kb1, kw2, kb2 = jax.random.split(key, 6)

    x = jax.random.normal(kx, (N, input_dim), dtype=jnp.float32)
    adj = jax.random.uniform(kadj, (N, N), dtype=jnp.float32)

    # nn.Linear(in, out) stores weight as (out, in); we keep the transpose so the
    # kernel does x @ W directly.
    w1 = jax.random.normal(kw1, (input_dim, hidden_dim), dtype=jnp.float32) * 0.1
    b1 = jax.random.normal(kb1, (hidden_dim,), dtype=jnp.float32) * 0.1
    w2 = jax.random.normal(kw2, (hidden_dim, output_dim), dtype=jnp.float32) * 0.1
    b2 = jax.random.normal(kb2, (output_dim,), dtype=jnp.float32) * 0.1

    out = gcn_forward(x, adj, w1, b1, w2, b2, tile_m=16)
    out = jax.block_until_ready(out)

    ref = gcn_reference(x, adj, w1, b1, w2, b2)
    assert out.shape == (N, output_dim)
    # bf16 inputs with f32 accumulation -> loosened tolerance vs the f32 reference.
    assert jnp.allclose(out, ref, atol=3e-2, rtol=3e-2), "mismatch vs reference"

    print("KERNEL_OK")
</pallas_src>

<mosaic_0001>
module attributes {stable_mosaic.version = 11 : i64} {
  func.func @gcn_kernel(%arg0: i32, %arg1: memref<48x128xbf16, #tpu.memory_space<vmem>>, %arg2: memref<16x48xbf16, #tpu.memory_space<vmem>>, %arg3: memref<128x128xbf16, #tpu.memory_space<vmem>>, %arg4: memref<1x128xf32, #tpu.memory_space<vmem>>, %arg5: memref<128x128xbf16, #tpu.memory_space<vmem>>, %arg6: memref<1x128xf32, #tpu.memory_space<vmem>>, %arg7: memref<16x128xf32, #tpu.memory_space<vmem>>, %arg8: memref<48x128xbf16, #tpu.memory_space<vmem>>) attributes {dimension_semantics = [#tpu.dimension_semantics<arbitrary>], iteration_bounds = array<i64: 3>, scalar_prefetch = 0 : i64, scratch_operands = 1 : i64, tpu.core_type = #tpu.core_type<tc>, window_params = [{pipeline_mode = #tpu.pipeline_mode<synchronous>, transform_indices = @transform_0, window_bounds = array<i64: 48, 128>}, {transform_indices = @transform_1, window_bounds = array<i64: 16, 48>}, {pipeline_mode = #tpu.pipeline_mode<synchronous>, transform_indices = @transform_2, window_bounds = array<i64: 128, 128>}, {pipeline_mode = #tpu.pipeline_mode<synchronous>, transform_indices = @transform_3, window_bounds = array<i64: 1, 128>}, {pipeline_mode = #tpu.pipeline_mode<synchronous>, transform_indices = @transform_4, window_bounds = array<i64: 128, 128>}, {pipeline_mode = #tpu.pipeline_mode<synchronous>, transform_indices = @transform_5, window_bounds = array<i64: 1, 128>}, {transform_indices = @transform_6, window_bounds = array<i64: 16, 128>}]} {
    %c0_i32 = arith.constant 0 : i32
    %0 = arith.cmpi eq, %arg0, %c0_i32 : i32
    %1 = arith.extui %0 : i1 to i32
    %c0_i32_0 = arith.constant 0 : i32
    %2 = arith.cmpi ne, %1, %c0_i32_0 : i32
    scf.if %2 {
      %c0_6 = arith.constant 0 : index
      %c0_7 = arith.constant 0 : index
      %7 = vector.load %arg1[%c0_6, %c0_7] : memref<48x128xbf16, #tpu.memory_space<vmem>>, vector<48x128xbf16>
      %c0_8 = arith.constant 0 : index
      %c0_9 = arith.constant 0 : index
      %8 = vector.load %arg3[%c0_8, %c0_9] : memref<128x128xbf16, #tpu.memory_space<vmem>>, vector<128x128xbf16>
      %cst_10 = arith.constant dense<0.000000e+00> : vector<48x128xf32>
      %9 = tpu.matmul %7, %8, %cst_10 {dimension_numbers = #tpu.dot_dimension_numbers<[1], [0], [0], [1], [0, 0, 1, 1], [], []>} : vector<48x128xbf16>, vector<128x128xbf16>, vector<48x128xf32> -> vector<48x128xf32>
      %c0_11 = arith.constant 0 : index
      %c0_12 = arith.constant 0 : index
      %10 = vector.load %arg4[%c0_11, %c0_12] : memref<1x128xf32, #tpu.memory_space<vmem>>, vector<1x128xf32>
      %11 = vector.broadcast %10 : vector<1x128xf32> to vector<48x128xf32>
      %12 = arith.addf %9, %11 : vector<48x128xf32>
      %cst_13 = arith.constant 0.000000e+00 : f32
      %13 = vector.broadcast %cst_13 : f32 to vector<48x128xf32>
      %14 = arith.maximumf %12, %13 : vector<48x128xf32>
      %15 = arith.truncf %14 : vector<48x128xf32> to vector<48x128xbf16>
      %c0_14 = arith.constant 0 : index
      %c0_15 = arith.constant 0 : index
      %16 = vector.load %arg5[%c0_14, %c0_15] : memref<128x128xbf16, #tpu.memory_space<vmem>>, vector<128x128xbf16>
      %cst_16 = arith.constant dense<0.000000e+00> : vector<48x128xf32>
      %17 = tpu.matmul %15, %16, %cst_16 {dimension_numbers = #tpu.dot_dimension_numbers<[1], [0], [0], [1], [0, 0, 1, 1], [], []>} : vector<48x128xbf16>, vector<128x128xbf16>, vector<48x128xf32> -> vector<48x128xf32>
      %c0_17 = arith.constant 0 : index
      %c0_18 = arith.constant 0 : index
      %18 = vector.load %arg6[%c0_17, %c0_18] : memref<1x128xf32, #tpu.memory_space<vmem>>, vector<1x128xf32>
      %19 = vector.broadcast %18 : vector<1x128xf32> to vector<48x128xf32>
      %20 = arith.addf %17, %19 : vector<48x128xf32>
      %21 = arith.truncf %20 : vector<48x128xf32> to vector<48x128xbf16>
      %c0_19 = arith.constant 0 : index
      %c0_20 = arith.constant 0 : index
      %22 = vector.load %arg8[%c0_19, %c0_20] : memref<48x128xbf16, #tpu.memory_space<vmem>>, vector<48x128xbf16>
      tpu.vector_store %arg8[%c0_19, %c0_20], %21 {strides = array<i32>} : memref<48x128xbf16, #tpu.memory_space<vmem>>, vector<48x128xbf16>,
    } else {
    }
    %c0 = arith.constant 0 : index
    %c0_1 = arith.constant 0 : index
    %3 = vector.load %arg2[%c0, %c0_1] : memref<16x48xbf16, #tpu.memory_space<vmem>>, vector<16x48xbf16>
    %c0_2 = arith.constant 0 : index
    %c0_3 = arith.constant 0 : index
    %4 = vector.load %arg8[%c0_2, %c0_3] : memref<48x128xbf16, #tpu.memory_space<vmem>>, vector<48x128xbf16>
    %cst = arith.constant dense<0.000000e+00> : vector<16x128xf32>
    %5 = tpu.matmul %3, %4, %cst {dimension_numbers = #tpu.dot_dimension_numbers<[1], [0], [0], [1], [0, 0, 1, 1], [], []>} : vector<16x48xbf16>, vector<48x128xbf16>, vector<16x128xf32> -> vector<16x128xf32>
    %c0_4 = arith.constant 0 : index
    %c0_5 = arith.constant 0 : index
    %6 = vector.load %arg7[%c0_4, %c0_5] : memref<16x128xf32, #tpu.memory_space<vmem>>, vector<16x128xf32>
    tpu.vector_store %arg7[%c0_4, %c0_5], %5 {strides = array<i32>} : memref<16x128xf32, #tpu.memory_space<vmem>>, vector<16x128xf32>,
    return
  }
  func.func @transform_0(%arg0: i32) -> (i32, i32) {
    %c0_i32 = arith.constant 0 : i32
    %c0_i32_0 = arith.constant 0 : i32
    %c0_i32_1 = arith.constant 0 : i32
    return %c0_i32, %c0_i32_0 : i32, i32
  }
  func.func @transform_1(%arg0: i32) -> (i32, i32) {
    %c0_i32 = arith.constant 0 : i32
    %c0_i32_0 = arith.constant 0 : i32
    return %arg0, %c0_i32 : i32, i32
  }
  func.func @transform_2(%arg0: i32) -> (i32, i32) {
    %c0_i32 = arith.constant 0 : i32
    %c0_i32_0 = arith.constant 0 : i32
    %c0_i32_1 = arith.constant 0 : i32
    return %c0_i32, %c0_i32_0 : i32, i32
  }
  func.func @transform_3(%arg0: i32) -> (i32, i32) {
    %c0_i32 = arith.constant 0 : i32
    %c0_i32_0 = arith.constant 0 : i32
    %c0_i32_1 = arith.constant 0 : i32
    return %c0_i32, %c0_i32_0 : i32, i32
  }
  func.func @transform_4(%arg0: i32) -> (i32, i32) {
    %c0_i32 = arith.constant 0 : i32
    %c0_i32_0 = arith.constant 0 : i32
    %c0_i32_1 = arith.constant 0 : i32
    return %c0_i32, %c0_i32_0 : i32, i32
  }
  func.func @transform_5(%arg0: i32) -> (i32, i32) {
    %c0_i32 = arith.constant 0 : i32
    %c0_i32_0 = arith.constant 0 : i32
    %c0_i32_1 = arith.constant 0 : i32
    return %c0_i32, %c0_i32_0 : i32, i32
  }
  func.func @transform_6(%arg0: i32) -> (i32, i32) {
    %c0_i32 = arith.constant 0 : i32
    %c0_i32_0 = arith.constant 0 : i32
    return %arg0, %c0_i32 : i32, i32
  }
}

</mosaic_0001>

<llo_original>
// kernel: gcn_forward.1
$region0: #{gcn_forward.1}
  #allocation0 [shape = 'u32[]', space=smem, size = 0x4, offset = 0x4, fixed_abs, tag = 'smem constant byte address 0x4 - core index']
  #allocation1 [shape = 'u32[144,128]{1,0:T(1,128)}', space=vmem, size = 0x12000, scoped, tag = 'internal scratch']
  #allocation2 [shape = 'bf16[48,128]{1,0:T(8,128)(2,1)}', space=vmem, size = 0x3000, scoped, tag = 'scratch operand']
  %s0 = inlined_call_operand.vmem [shape: bf16[48,128], index: 0, kind: input, shape index: {}]
  %s1 = inlined_call_operand.vmem [shape: bf16[48,48], index: 1, kind: input, shape index: {}]
  %s2 = inlined_call_operand.vmem [shape: bf16[128,128], index: 2, kind: input, shape index: {}]
  %s3 = inlined_call_operand.vmem [shape: f32[1,128], index: 3, kind: input, shape index: {}]
  %s4 = inlined_call_operand.vmem [shape: bf16[128,128], index: 4, kind: input, shape index: {}]
  %s5 = inlined_call_operand.vmem [shape: f32[1,128], index: 5, kind: input, shape index: {}]
  %s6 = inlined_call_operand.vmem [shape: f32[48,128], index: 6, kind: output, shape index: {}]
  %s7 = sld [smem:[#allocation0]]
  $region61: #{gcn_forward.1} parent=0
    _
  %s9 = ssub.s32 1, %s7
  %s10 = scalar_select 0, %s9, %s7
  loop: start=0, step=1, limit=5
  $region2: #{gcn_forward.1} parent=0 // loop_pre_header
    _
  $region3: #{gcn_forward.1} parent=0 // loop_header
    %s12 = sphi 0, %s16
    %p13 = scmp.ge.s32.totalorder %s12, 5
    %s20 = sphi 0, %s20
    %s22 = sphi 0, %s20
    %s23 = sphi 0, %s22
    %s37 = sphi 0, %s23
    %s43 = sphi 0, %s45
    %s46 = sphi 0, %s43
    %s47 = sphi 0, %s46
    %s63 = sphi 0, %s47
    %s67 = sphi 0, %s67
    %s69 = sphi 0, %s67
    %s70 = sphi 0, %s69
    %s84 = sphi 0, %s70
    %s88 = sphi 0, %s88
    %s90 = sphi 0, %s88
    %s91 = sphi 0, %s90
    %s105 = sphi 0, %s91
    %s109 = sphi 0, %s109
    %s111 = sphi 0, %s109
    %s112 = sphi 0, %s111
    %s126 = sphi 0, %s112
    %s130 = sphi 0, %s130
    %s132 = sphi 0, %s130
    %s133 = sphi 0, %s132
    %s147 = sphi 0, %s133
    %s153 = sphi 0, %s155
    %s156 = sphi 0, %s153
    %s157 = sphi 0, %s156
    %s173 = sphi 0, %s157
  $region4: #{gcn_forward.1} parent=0 // loop_header_branch
    %15 = sbr.rel (%p13) target = $region8
  $region5: #{gcn_forward.1} parent=0 // loop_body
    %s17 = ssub.s32 %s12, 1
    %s18 = ssub.s32 %s12, 2
    %s19 = sadd.s32 %s12, 1
    %s21 = sadd.s32 %s20, 1
    %p24 = scmp.eq.s32.totalorder %s12, 2
    %p25 = scmp.ne.s32.totalorder %s20, %s22
    %p26 = scmp.eq.s32.totalorder %s12, 0
    %p27 = por %p25, %p26
    %p28 = scmp.ne.s32.totalorder %s20, %s22
    %p29 = scmp.eq.s32.totalorder %s17, 2
    %p30 = por %p28, %p29
    %p31 = scmp.ne.s32.totalorder %s22, %s23
    %p32 = scmp.eq.s32.totalorder %s17, 0
    %p33 = por %p31, %p32
    %p34 = scmp.ne.s32.totalorder %s22, %s23
    %p35 = scmp.eq.s32.totalorder %s18, 2
    %p36 = por %p34, %p35
    %p38 = scmp.ne.s32.totalorder %s23, %s37
    %p39 = scmp.eq.s32.totalorder %s18, 0
    %p40 = por %p38, %p39
    %s41 = ssub.s32 %s12, %s19
    %p42 = scmp.eq.s32.totalorder %s41, 0
    %s44 = sadd.s32 %s43, 1
    %s45 = scalar_select %p42, %s43, %s44
    %p48 = pneg %p42
    %p49 = scmp.eq.s32.totalorder %s12, 2
    %p50 = por %p48, %p49
    %p51 = scmp.ne.s32.totalorder %s43, %s46
    %p52 = scmp.eq.s32.totalorder %s12, 0
    %p53 = por %p51, %p52
    %p54 = scmp.ne.s32.totalorder %s43, %s46
    %p55 = scmp.eq.s32.totalorder %s17, 2
    %p56 = por %p54, %p55
    %p57 = scmp.ne.s32.totalorder %s46, %s47
    %p58 = scmp.eq.s32.totalorder %s17, 0
    %p59 = por %p57, %p58
    %p60 = scmp.ne.s32.totalorder %s46, %s47
    %p61 = scmp.eq.s32.totalorder %s18, 2
    %p62 = por %p60, %p61
    %p64 = scmp.ne.s32.totalorder %s47, %s63
    %p65 = scmp.eq.s32.totalorder %s18, 0
    %p66 = por %p64, %p65
    %s68 = sadd.s32 %s67, 1
    %p71 = scmp.eq.s32.totalorder %s12, 2
    %p72 = scmp.ne.s32.totalorder %s67, %s69
    %p73 = scmp.eq.s32.totalorder %s12, 0
    %p74 = por %p72, %p73
    %p75 = scmp.ne.s32.totalorder %s67, %s69
    %p76 = scmp.eq.s32.totalorder %s17, 2
    %p77 = por %p75, %p76
    %p78 = scmp.ne.s32.totalorder %s69, %s70
    %p79 = scmp.eq.s32.totalorder %s17, 0
    %p80 = por %p78, %p79
    %p81 = scmp.ne.s32.totalorder %s69, %s70
    %p82 = scmp.eq.s32.totalorder %s18, 2
    %p83 = por %p81, %p82
    %p85 = scmp.ne.s32.totalorder %s70, %s84
    %p86 = scmp.eq.s32.totalorder %s18, 0
    %p87 = por %p85, %p86
    %s89 = sadd.s32 %s88, 1
    %p92 = scmp.eq.s32.totalorder %s12, 2
    %p93 = scmp.ne.s32.totalorder %s88, %s90
    %p94 = scmp.eq.s32.totalorder %s12, 0
    %p95 = por %p93, %p94
    %p96 = scmp.ne.s32.totalorder %s88, %s90
    %p97 = scmp.eq.s32.totalorder %s17, 2
    %p98 = por %p96, %p97
    %p99 = scmp.ne.s32.totalorder %s90, %s91
    %p100 = scmp.eq.s32.totalorder %s17, 0
    %p101 = por %p99, %p100
    %p102 = scmp.ne.s32.totalorder %s90, %s91
    %p103 = scmp.eq.s32.totalorder %s18, 2
    %p104 = por %p102, %p103
    %p106 = scmp.ne.s32.totalorder %s91, %s105
    %p107 = scmp.eq.s32.totalorder %s18, 0
    %p108 = por %p106, %p107
    %s110 = sadd.s32 %s109, 1
    %p113 = scmp.eq.s32.totalorder %s12, 2
    %p114 = scmp.ne.s32.totalorder %s109, %s111
    %p115 = scmp.eq.s32.totalorder %s12, 0
    %p116 = por %p114, %p115
    %p117 = scmp.ne.s32.totalorder %s109, %s111
    %p118 = scmp.eq.s32.totalorder %s17, 2
    %p119 = por %p117, %p118
    %p120 = scmp.ne.s32.totalorder %s111, %s112
    %p121 = scmp.eq.s32.totalorder %s17, 0
    %p122 = por %p120, %p121
    %p123 = scmp.ne.s32.totalorder %s111, %s112
    %p124 = scmp.eq.s32.totalorder %s18, 2
    %p125 = por %p123, %p124
    %p127 = scmp.ne.s32.totalorder %s112, %s126
    %p128 = scmp.eq.s32.totalorder %s18, 0
    %p129 = por %p127, %p128
    %s131 = sadd.s32 %s130, 1
    %p134 = scmp.eq.s32.totalorder %s12, 2
    %p135 = scmp.ne.s32.totalorder %s130, %s132
    %p136 = scmp.eq.s32.totalorder %s12, 0
    %p137 = por %p135, %p136
    %p138 = scmp.ne.s32.totalorder %s130, %s132
    %p139 = scmp.eq.s32.totalorder %s17, 2
    %p140 = por %p138, %p139
    %p141 = scmp.ne.s32.totalorder %s132, %s133
    %p142 = scmp.eq.s32.totalorder %s17, 0
    %p143 = por %p141, %p142
    %p144 = scmp.ne.s32.totalorder %s132, %s133
    %p145 = scmp.eq.s32.totalorder %s18, 2
    %p146 = por %p144, %p145
    %p148 = scmp.ne.s32.totalorder %s133, %s147
    %p149 = scmp.eq.s32.totalorder %s18, 0
    %p150 = por %p148, %p149
    %s151 = ssub.s32 %s12, %s19
    %p152 = scmp.eq.s32.totalorder %s151, 0
    %s154 = sadd.s32 %s153, 1
    %s155 = scalar_select %p152, %s153, %s154
    %p158 = pneg %p152
    %p159 = scmp.eq.s32.totalorder %s12, 2
    %p160 = por %p158, %p159
    %p161 = scmp.ne.s32.totalorder %s153, %s156
    %p162 = scmp.eq.s32.totalorder %s12, 0
    %p163 = por %p161, %p162
    %p164 = scmp.ne.s32.totalorder %s153, %s156
    %p165 = scmp.eq.s32.totalorder %s17, 2
    %p166 = por %p164, %p165
    %p167 = scmp.ne.s32.totalorder %s156, %s157
    %p168 = scmp.eq.s32.totalorder %s17, 0
    %p169 = por %p167, %p168
    %p170 = scmp.ne.s32.totalorder %s156, %s157
    %p171 = scmp.eq.s32.totalorder %s18, 2
    %p172 = por %p170, %p171
    %p174 = scmp.ne.s32.totalorder %s157, %s173
    %p175 = scmp.eq.s32.totalorder %s18, 0
    %p176 = por %p174, %p175
    %p177 = scmp.le.s32.totalorder 1, %s12
    %p178 = scmp.lt.s32.totalorder %s12, 4
    %p179 = pnand %p177, %p178
    %p180 = pneg %p179
    // Predicated region
    $region9: #{gcn_forward.1} parent=5 // pred_check
      _
    $region10: #{gcn_forward.1} parent=5 // pred_check_branch
      %182 = sbr.rel (%p179) target = $region12
    $region11: #{gcn_forward.1} parent=5 // pred_region
      %s183 = ssub.s32 %s12, 1
      // Predicated region
      $region13: #{gcn_forward.1} parent=11 // pred_check
        %p184 = pneg %p33
      $region14: #{gcn_forward.1} parent=11 // pred_check_branch
        %186 = sbr.rel (%p184) target = $region16
      $region15: #{gcn_forward.1} parent=11 // pred_region
        _
      $region16: #{gcn_forward.1} parent=11 // pred_fallthru
        _
      // Predicated region
      $region17: #{gcn_forward.1} parent=11 // pred_check
        %p187 = pneg %p80
      $region18: #{gcn_forward.1} parent=11 // pred_check_branch
        %189 = sbr.rel (%p187) target = $region20
      $region19: #{gcn_forward.1} parent=11 // pred_region
        _
      $region20: #{gcn_forward.1} parent=11 // pred_fallthru
        _
      // Predicated region
      $region21: #{gcn_forward.1} parent=11 // pred_check
        %p190 = pneg %p101
      $region22: #{gcn_forward.1} parent=11 // pred_check_branch
        %192 = sbr.rel (%p190) target = $region24
      $region23: #{gcn_forward.1} parent=11 // pred_region
        _
      $region24: #{gcn_forward.1} parent=11 // pred_fallthru
        _
      // Predicated region
      $region25: #{gcn_forward.1} parent=11 // pred_check
        %p193 = pneg %p122
      $region26: #{gcn_forward.1} parent=11 // pred_check_branch
        %195 = sbr.rel (%p193) target = $region28
      $region27: #{gcn_forward.1} parent=11 // pred_region
        _
      $region28: #{gcn_forward.1} parent=11 // pred_fallthru
        _
      // Predicated region
      $region29: #{gcn_forward.1} parent=11 // pred_check
        %p196 = pneg %p143
      $region30: #{gcn_forward.1} parent=11 // pred_check_branch
        %198 = sbr.rel (%p196) target = $region32
      $region31: #{gcn_forward.1} parent=11 // pred_region
        _
      $region32: #{gcn_forward.1} parent=11 // pred_fallthru
        _
    $region12: #{gcn_forward.1} parent=5 // pred_fallthru
      _
    %p199 = scmp.lt.s32.totalorder %s12, 3
    // Predicated region
    $region33: #{gcn_forward.1} parent=5 // pred_check
      %p200 = pneg %p199
    $region34: #{gcn_forward.1} parent=5 // pred_check_branch
      %202 = sbr.rel (%p200) target = $region36
    $region35: #{gcn_forward.1} parent=5 // pred_region
      // Predicated region
      $region37: #{gcn_forward.1} parent=35 // pred_check
        %p203 = pneg %p53
      $region38: #{gcn_forward.1} parent=35 // pred_check_branch
        %205 = sbr.rel (%p203) target = $region40
      $region39: #{gcn_forward.1} parent=35 // pred_region
        %s206 = smul.u32 2, %s12
        %p207 = scmp.lt.s32.totalorder %s206, 5
        %s208 = scalar_select %p207, %s206, 5
        %s209 = smul.addr %s208, 4
        %s210 = scalar_lea.vmem %s1, %s209
        %s211 = smul.u32 2, %s12
      $region40: #{gcn_forward.1} parent=35 // pred_fallthru
        _
    $region36: #{gcn_forward.1} parent=5 // pred_fallthru
      _
    %p212 = scmp.le.s32.totalorder 1, %s12
    %p213 = scmp.lt.s32.totalorder %s12, 4
    %p214 = pnand %p212, %p213
    %p215 = pneg %p214
    // Predicated region
    $region41: #{gcn_forward.1} parent=5 // pred_check
      _
    $region42: #{gcn_forward.1} parent=5 // pred_check_branch
      %217 = sbr.rel (%p214) target = $region44
    $region43: #{gcn_forward.1} parent=5 // pred_region
      %s218 = ssub.s32 %s12, 1
      %p219 = pneg %p33
      %p220 = pneg %p30
      %s221 = smul.u32 2, %s17
      %p222 = scmp.lt.s32.totalorder %s221, 5
      %s223 = scalar_select %p222, %s221, 5
      %s224 = smul.addr %s223, 4
      %s225 = scalar_lea.vmem %s1, %s224
      %p226 = pneg %p59
      %p227 = pneg %p56
      %p228 = pneg %p80
      %p229 = pneg %p77
      %p230 = pneg %p101
      %p231 = pneg %p98
      %p232 = pneg %p122
      %p233 = pneg %p119
      %p234 = pneg %p143
      %p235 = pneg %p140
      %p236 = pneg %p169
      %p237 = pneg %p166
      %s238 = smul.u32 2, %s17
      %p239 = scmp.lt.s32.totalorder %s238, 5
      %s240 = scalar_select %p239, %s238, 5
      %s241 = smul.addr %s240, 8
      %s242 = scalar_lea.vmem %s6, %s241
      %s243 = smul.u32 2, %s17
      %p244 = scmp.lt.s32.totalorder %s243, 5
      %s245 = scalar_select %p244, %s243, 5
      %s246 = smul.addr %s245, 4
      %s247 = scalar_lea.vmem %s1, %s246
      %s248 = smul.u32 2, %s17
      %s249 = smul.u32 2, %s17
      %p250 = scmp.lt.s32.totalorder %s249, 5
      %s251 = scalar_select %p250, %s249, 5
      %s252 = smul.addr %s251, 8
      %s253 = scalar_lea.vmem %s6, %s252
      %s254 = smul.u32 2, %s17
      %p256 = scmp.eq.s32.totalorder %s17, 0
      // Predicated region
      $region45: #{gcn_forward.1} parent=43 // pred_check
        %p257 = pneg %p256
      $region46: #{gcn_forward.1} parent=43 // pred_check_branch
        %259 = sbr.rel (%p257) target = $region48
      $region47: #{gcn_forward.1} parent=43 // pred_region
        %v260 = vld [vmem:[%s0] sm:$0xf]
        %v261 = vld [vmem:[%s0 + $0x4] sm:$0xf]
        %v262 = vld [vmem:[%s0 + $0x8] sm:$0xf]
        %v263 = vld [vmem:[%s0 + $0xc] sm:$0xf]
        %v264 = vld [vmem:[%s0 + $0x10] sm:$0xf]
        %v265 = vld [vmem:[%s0 + $0x14] sm:$0xf]
        %v266 = vld [vmem:[%s2] sm:$0xf]
        %v267 = vld [vmem:[%s2 + $0x4] sm:$0xf]
        %v268 = vld [vmem:[%s2 + $0x8] sm:$0xf]
        %v269 = vld [vmem:[%s2 + $0xc] sm:$0xf]
        %v270 = vld [vmem:[%s2 + $0x10] sm:$0xf]
        %v271 = vld [vmem:[%s2 + $0x14] sm:$0xf]
        %v272 = vld [vmem:[%s2 + $0x18] sm:$0xf]
        %v273 = vld [vmem:[%s2 + $0x1c] sm:$0xf]
        %v274 = vld [vmem:[%s2 + $0x20] sm:$0xf]
        %v275 = vld [vmem:[%s2 + $0x24] sm:$0xf]
        %v276 = vld [vmem:[%s2 + $0x28] sm:$0xf]
        %v277 = vld [vmem:[%s2 + $0x2c] sm:$0xf]
        %v278 = vld [vmem:[%s2 + $0x30] sm:$0xf]
        %v279 = vld [vmem:[%s2 + $0x34] sm:$0xf]
        %v280 = vld [vmem:[%s2 + $0x38] sm:$0xf]
        %v281 = vld [vmem:[%s2 + $0x3c] sm:$0xf]
        %v282 = vld [vmem:[%s3] sm:$0x1]
        %v284 = vlaneseq
        %v285 = vshrl.u32 %v284, 7
        %v286 = vsub.s32 0, %v285
        %v287 = vrot.slane %v282, %v286
        %v295 = vunpack.c.l.b16 %v260
        %v296 = vunpack.c.l.b16 %v261
        %v297 = vunpack.c.l.b16 %v262
        %v298 = vunpack.c.l.b16 %v263
        %v299 = vunpack.c.l.b16 %v264
        %v300 = vunpack.c.l.b16 %v265
        %v301 = vpack.c.b16 %v296, %v295
        %v302 = vpack.c.b16 %v298, %v297
        %v303 = vpack.c.b16 %v300, %v299
        %v323 = vunpack.c.l.b16 %v266
        %v324 = vunpack.c.l.b16 %v267
        %v325 = vunpack.c.l.b16 %v268
        %v326 = vunpack.c.l.b16 %v269
        %v327 = vunpack.c.l.b16 %v270
        %v328 = vunpack.c.l.b16 %v271
        %v329 = vunpack.c.l.b16 %v272
        %v330 = vunpack.c.l.b16 %v273
        %v331 = vunpack.c.l.b16 %v274
        %v332 = vunpack.c.l.b16 %v275
        %v333 = vunpack.c.l.b16 %v276
        %v334 = vunpack.c.l.b16 %v277
        %v335 = vunpack.c.l.b16 %v278
        %v336 = vunpack.c.l.b16 %v279
        %v337 = vunpack.c.l.b16 %v280
        %v338 = vunpack.c.l.b16 %v281
        %v339 = vpack.c.b16 %v324, %v323
        %v340 = vpack.c.b16 %v326, %v325
        %v341 = vpack.c.b16 %v328, %v327
        %v342 = vpack.c.b16 %v330, %v329
        %v343 = vpack.c.b16 %v332, %v331
        %v344 = vpack.c.b16 %v334, %v333
        %v345 = vpack.c.b16 %v336, %v335
        %v346 = vpack.c.b16 %v338, %v337
        %355 = vmatprep.subr.bf16.mxu0 0
        %356 = vmatpush1.bf16.msra.mxu0 %v346
        %357 = vmatprep.subr.bf16.mxu0 0
        %358 = vmatpush1.bf16.msra.mxu0 %v345
        %359 = vmatprep.subr.bf16.mxu0 0
        %360 = vmatpush1.bf16.msra.mxu0 %v344
        %361 = vmatprep.subr.bf16.mxu0 0
        %362 = vmatpush1.bf16.msra.mxu0 %v343
        %363 = vmatprep.subr.bf16.mxu0 0
        %364 = vmatpush1.bf16.msra.mxu0 %v342
        %365 = vmatprep.subr.bf16.mxu0 0
        %366 = vmatpush1.bf16.msra.mxu0 %v341
        %367 = vmatprep.subr.bf16.mxu0 0
        %368 = vmatpush1.bf16.msra.mxu0 %v340
        %369 = vmatprep.subr.bf16.mxu0 0
        %370 = vmatpush1.bf16.msra.mxu0 %v339
        %371 = vmatprep.subr.bf16.mxu0 0
        %372 = vmatpush2.bf16.msra.mxu0 0
        %373 = vmatprep.subr.bf16.mxu0 0
        %374 = vmatpush2.bf16.msra.mxu0 0
        %375 = vmatprep.subr.bf16.mxu0 0
        %376 = vmatpush2.bf16.msra.mxu0 0
        %377 = vmatprep.subr.bf16.mxu0 0
        %378 = vmatpush2.bf16.msra.mxu0 0
        %379 = vmatprep.subr.bf16.mxu0 0
        %380 = vmatpush2.bf16.msra.mxu0 0
        %381 = vmatprep.subr.bf16.mxu0 0
        %382 = vmatpush2.bf16.msra.mxu0 0
        %383 = vmatprep.subr.bf16.mxu0 0
        %384 = vmatpush2.bf16.msra.mxu0 0
        %385 = vmatprep.subr.bf16.mxu0 0
        %386 = vmatpush2.bf16.msra.mxu0 0
        %387 = vmatprep.mubr.bf16.mxu0 0
        %388 = vmatmul.mubr.bf16.gmra.mxu0 %v301
        %v389 = vpop.f32.mrf.mxu0
        %v390 = vadd.f32 %v287, %v389
        %v391 = vpop.f32.mrf.mxu0
        %v392 = vpop.f32.mrf.mxu0
        %v393 = vadd.f32 %v287, %v392
        %v394 = vpop.f32.mrf.mxu0
        %395 = vmatprep.mubr.bf16.mxu0 0
        %396 = vmatmul.mubr.bf16.gmra.mxu0 %v302
        %v397 = vpop.f32.mrf.mxu0
        %v398 = vadd.f32 %v287, %v397
        %v399 = vpop.f32.mrf.mxu0
        %v400 = vpop.f32.mrf.mxu0
        %v401 = vadd.f32 %v287, %v400
        %v402 = vpop.f32.mrf.mxu0
        %403 = vmatprep.mubr.bf16.mxu0 0
        %404 = vmatmul.mubr.bf16.gmra.mxu0 %v303
        %v405 = vpop.f32.mrf.mxu0
        %v406 = vadd.f32 %v287, %v405
        %v407 = vpop.f32.mrf.mxu0
        %v408 = vpop.f32.mrf.mxu0
        %v409 = vadd.f32 %v287, %v408
        %v410 = vpop.f32.mrf.mxu0
        %411 = vdwg.mxu0
        %v412 = vmax.f32 %v390, 0.0
        %v413 = vmax.f32 %v393, 0.0
        %v414 = vmax.f32 %v398, 0.0
        %v415 = vmax.f32 %v401, 0.0
        %v416 = vmax.f32 %v406, 0.0
        %v417 = vmax.f32 %v409, 0.0
        %v418 = vpack.c.bf16 %v413, %v412
        %v419 = vpack.c.bf16 %v415, %v414
        %v420 = vpack.c.bf16 %v417, %v416
        %v421 = vld [vmem:[%s4] sm:$0xf]
        %v422 = vld [vmem:[%s4 + $0x4] sm:$0xf]
        %v423 = vld [vmem:[%s4 + $0x8] sm:$0xf]
        %v424 = vld [vmem:[%s4 + $0xc] sm:$0xf]
        %v425 = vld [vmem:[%s4 + $0x10] sm:$0xf]
        %v426 = vld [vmem:[%s4 + $0x14] sm:$0xf]
        %v427 = vld [vmem:[%s4 + $0x18] sm:$0xf]
        %v428 = vld [vmem:[%s4 + $0x1c] sm:$0xf]
        %v429 = vld [vmem:[%s4 + $0x20] sm:$0xf]
        %v430 = vld [vmem:[%s4 + $0x24] sm:$0xf]
        %v431 = vld [vmem:[%s4 + $0x28] sm:$0xf]
        %v432 = vld [vmem:[%s4 + $0x2c] sm:$0xf]
        %v433 = vld [vmem:[%s4 + $0x30] sm:$0xf]
        %v434 = vld [vmem:[%s4 + $0x34] sm:$0xf]
        %v435 = vld [vmem:[%s4 + $0x38] sm:$0xf]
        %v436 = vld [vmem:[%s4 + $0x3c] sm:$0xf]
        %v437 = vld [vmem:[%s5] sm:$0x1]
        %v439 = vlaneseq
        %v440 = vshrl.u32 %v439, 7
        %v441 = vsub.s32 0, %v440
        %v442 = vrot.slane %v437, %v441
        %v460 = vunpack.c.l.b16 %v421
        %v461 = vunpack.c.l.b16 %v422
        %v462 = vunpack.c.l.b16 %v423
        %v463 = vunpack.c.l.b16 %v424
        %v464 = vunpack.c.l.b16 %v425
        %v465 = vunpack.c.l.b16 %v426
        %v466 = vunpack.c.l.b16 %v427
        %v467 = vunpack.c.l.b16 %v428
        %v468 = vunpack.c.l.b16 %v429
        %v469 = vunpack.c.l.b16 %v430
        %v470 = vunpack.c.l.b16 %v431
        %v471 = vunpack.c.l.b16 %v432
        %v472 = vunpack.c.l.b16 %v433
        %v473 = vunpack.c.l.b16 %v434
        %v474 = vunpack.c.l.b16 %v435
        %v475 = vunpack.c.l.b16 %v436
        %v476 = vpack.c.b16 %v461, %v460
        %v477 = vpack.c.b16 %v463, %v462
        %v478 = vpack.c.b16 %v465, %v464
        %v479 = vpack.c.b16 %v467, %v466
        %v480 = vpack.c.b16 %v469, %v468
        %v481 = vpack.c.b16 %v471, %v470
        %v482 = vpack.c.b16 %v473, %v472
        %v483 = vpack.c.b16 %v475, %v474
        %492 = vmatprep.subr.bf16.mxu0 0
        %493 = vmatpush1.bf16.msra.mxu0 %v483
        %494 = vmatprep.subr.bf16.mxu0 0
        %495 = vmatpush1.bf16.msra.mxu0 %v482
        %496 = vmatprep.subr.bf16.mxu0 0
        %497 = vmatpush1.bf16.msra.mxu0 %v481
        %498 = vmatprep.subr.bf16.mxu0 0
        %499 = vmatpush1.bf16.msra.mxu0 %v480
        %500 = vmatprep.subr.bf16.mxu0 0
        %501 = vmatpush1.bf16.msra.mxu0 %v479
        %502 = vmatprep.subr.bf16.mxu0 0
        %503 = vmatpush1.bf16.msra.mxu0 %v478
        %504 = vmatprep.subr.bf16.mxu0 0
        %505 = vmatpush1.bf16.msra.mxu0 %v477
        %506 = vmatprep.subr.bf16.mxu0 0
        %507 = vmatpush1.bf16.msra.mxu0 %v476
        %508 = vmatprep.subr.bf16.mxu0 0
        %509 = vmatpush2.bf16.msra.mxu0 0
        %510 = vmatprep.subr.bf16.mxu0 0
        %511 = vmatpush2.bf16.msra.mxu0 0
        %512 = vmatprep.subr.bf16.mxu0 0
        %513 = vmatpush2.bf16.msra.mxu0 0
        %514 = vmatprep.subr.bf16.mxu0 0
        %515 = vmatpush2.bf16.msra.mxu0 0
        %516 = vmatprep.subr.bf16.mxu0 0
        %517 = vmatpush2.bf16.msra.mxu0 0
        %518 = vmatprep.subr.bf16.mxu0 0
        %519 = vmatpush2.bf16.msra.mxu0 0
        %520 = vmatprep.subr.bf16.mxu0 0
        %521 = vmatpush2.bf16.msra.mxu0 0
        %522 = vmatprep.subr.bf16.mxu0 0
        %523 = vmatpush2.bf16.msra.mxu0 0
        %524 = vmatprep.mubr.bf16.mxu0 0
        %525 = vmatmul.mubr.bf16.gmra.mxu0 %v418
        %v526 = vpop.f32.mrf.mxu0
        %v527 = vadd.f32 %v442, %v526
        %v528 = vpop.f32.mrf.mxu0
        %v529 = vpop.f32.mrf.mxu0
        %v530 = vadd.f32 %v442, %v529
        %v531 = vpop.f32.mrf.mxu0
        %532 = vmatprep.mubr.bf16.mxu0 0
        %533 = vmatmul.mubr.bf16.gmra.mxu0 %v419
        %v534 = vpop.f32.mrf.mxu0
        %v535 = vadd.f32 %v442, %v534
        %v536 = vpop.f32.mrf.mxu0
        %v537 = vpop.f32.mrf.mxu0
        %v538 = vadd.f32 %v442, %v537
        %v539 = vpop.f32.mrf.mxu0
        %540 = vmatprep.mubr.bf16.mxu0 0
        %541 = vmatmul.mubr.bf16.gmra.mxu0 %v420
        %v542 = vpop.f32.mrf.mxu0
        %v543 = vadd.f32 %v442, %v542
        %v544 = vpop.f32.mrf.mxu0
        %v545 = vpop.f32.mrf.mxu0
        %v546 = vadd.f32 %v442, %v545
        %v547 = vpop.f32.mrf.mxu0
        %548 = vdwg.mxu0
        %v549 = vpack.c.bf16 %v530, %v527
        %v550 = vpack.c.bf16 %v538, %v535
        %v551 = vpack.c.bf16 %v546, %v543
        %v555 = vunpack.c.l.b16 %v549
        %v556 = vunpack.c.h.b16 %v549
        %v557 = vunpack.c.l.b16 %v550
        %v558 = vunpack.c.h.b16 %v550
        %v559 = vunpack.c.l.b16 %v551
        %v560 = vunpack.c.h.b16 %v551
        %v561 = vpack.c.b16 %v555, %v555
        %v562 = vpack.c.b16 %v556, %v556
        %v563 = vpack.c.b16 %v557, %v557
        %v564 = vpack.c.b16 %v558, %v558
        %v565 = vpack.c.b16 %v559, %v559
        %v566 = vpack.c.b16 %v560, %v560
        %573 = vst [vmem:[#allocation2] sm:$0xf] %v561
        %574 = vst [vmem:[#allocation2 + $0x4] sm:$0xf] %v562
        %575 = vst [vmem:[#allocation2 + $0x8] sm:$0xf] %v563
        %576 = vst [vmem:[#allocation2 + $0xc] sm:$0xf] %v564
        %577 = vst [vmem:[#allocation2 + $0x10] sm:$0xf] %v565
        %578 = vst [vmem:[#allocation2 + $0x14] sm:$0xf] %v566
      $region48: #{gcn_forward.1} parent=43 // pred_fallthru
        _
      %v579 = vld [vmem:[%s247] sm:$0xf]
      %v580 = vld [vmem:[%s247 + $0x4] sm:$0xf]
      %v581 = vld [vmem:[#allocation2] sm:$0xf]
      %v582 = vld [vmem:[#allocation2 + $0x4] sm:$0xf]
      %v583 = vld [vmem:[#allocation2 + $0x8] sm:$0xf]
      %v584 = vld [vmem:[#allocation2 + $0xc] sm:$0xf]
      %v585 = vld [vmem:[#allocation2 + $0x10] sm:$0xf]
      %v586 = vld [vmem:[#allocation2 + $0x14] sm:$0xf]
      %v589 = vunpack.c.l.b16 %v579
      %v590 = vunpack.c.l.b16 %v580
      %v591 = vpack.c.b16 %v590, %v589
      %v598 = vunpack.c.l.b16 %v581
      %v599 = vunpack.c.l.b16 %v582
      %v600 = vunpack.c.l.b16 %v583
      %v601 = vunpack.c.l.b16 %v584
      %v602 = vunpack.c.l.b16 %v585
      %v603 = vunpack.c.l.b16 %v586
      %v604 = vpack.c.b16 %v599, %v598
      %v605 = vpack.c.b16 %v601, %v600
      %v606 = vpack.c.b16 %v603, %v602
      %vm610 = vcmask 392192
      %v612 = vsel %vm610, %v591, 0
      %614 = vmatprep.subr.bf16.mxu0 0
      %615 = vmatpush1.bf16.msra.mxu0 0
      %616 = vmatprep.subr.bf16.mxu0 0
      %617 = vmatpush1.bf16.msra.mxu0 0
      %618 = vmatprep.subr.bf16.mxu0 0
      %619 = vmatpush1.bf16.msra.mxu0 0
      %620 = vmatprep.subr.bf16.mxu0 0
      %621 = vmatpush1.bf16.msra.mxu0 0
      %622 = vmatprep.subr.bf16.mxu0 0
      %623 = vmatpush1.bf16.msra.mxu0 0
      %624 = vmatprep.subr.bf16.mxu0 0
      %625 = vmatpush1.bf16.msra.mxu0 %v606
      %626 = vmatprep.subr.bf16.mxu0 0
      %627 = vmatpush1.bf16.msra.mxu0 %v605
      %628 = vmatprep.subr.bf16.mxu0 0
      %629 = vmatpush1.bf16.msra.mxu0 %v604
      %630 = vmatprep.subr.bf16.mxu0 0
      %631 = vmatpush2.bf16.msra.mxu0 0
      %632 = vmatprep.subr.bf16.mxu0 0
      %633 = vmatpush2.bf16.msra.mxu0 0
      %634 = vmatprep.subr.bf16.mxu0 0
      %635 = vmatpush2.bf16.msra.mxu0 0
      %636 = vmatprep.subr.bf16.mxu0 0
      %637 = vmatpush2.bf16.msra.mxu0 0
      %638 = vmatprep.subr.bf16.mxu0 0
      %639 = vmatpush2.bf16.msra.mxu0 0
      %640 = vmatprep.subr.bf16.mxu0 0
      %641 = vmatpush2.bf16.msra.mxu0 0
      %642 = vmatprep.subr.bf16.mxu0 0
      %643 = vmatpush2.bf16.msra.mxu0 0
      %644 = vmatprep.subr.bf16.mxu0 0
      %645 = vmatpush2.bf16.msra.mxu0 0
      %646 = vmatprep.mubr.bf16.mxu0 0
      %647 = vmatmul.mubr.bf16.gmra.mxu0 %v612
      %v648 = vpop.f32.mrf.mxu0
      %v649 = vadd.f32 0.0, %v648
      %v650 = vpop.f32.mrf.mxu0
      %v651 = vpop.f32.mrf.mxu0
      %v652 = vadd.f32 0.0, %v651
      %v653 = vpop.f32.mrf.mxu0
      %654 = vdwg.mxu0
      %655 = vst [vmem:[%s253] sm:$0xff] %v649
      %656 = vst [vmem:[%s253 + $0x8] sm:$0xff] %v652
      %s657 = smul.u32 2, %s17
      %p658 = scmp.lt.s32.totalorder %s657, 5
      %s659 = scalar_select %p658, %s657, 5
      %s660 = smul.addr %s659, 8
      %s661 = scalar_lea.vmem %s6, %s660
      // Predicated region
      $region49: #{gcn_forward.1} parent=43 // pred_check
        %p662 = pneg %p166
      $region50: #{gcn_forward.1} parent=43 // pred_check_branch
        %664 = sbr.rel (%p662) target = $region52
      $region51: #{gcn_forward.1} parent=43 // pred_region
        %s665 = smul.u32 2, %s17
      $region52: #{gcn_forward.1} parent=43 // pred_fallthru
        _
    $region44: #{gcn_forward.1} parent=5 // pred_fallthru
      _
    %p666 = scmp.le.s32.totalorder 2, %s12
    // Predicated region
    $region53: #{gcn_forward.1} parent=5 // pred_check
      %p667 = pneg %p666
    $region54: #{gcn_forward.1} parent=5 // pred_check_branch
      %669 = sbr.rel (%p667) target = $region56
    $region55: #{gcn_forward.1} parent=5 // pred_region
      %s670 = ssub.s32 %s12, 2
      // Predicated region
      $region57: #{gcn_forward.1} parent=55 // pred_check
        %p671 = pneg %p172
      $region58: #{gcn_forward.1} parent=55 // pred_check_branch
        %673 = sbr.rel (%p671) target = $region60
      $region59: #{gcn_forward.1} parent=55 // pred_region
        %s674 = smul.u32 2, %s18
        %p675 = scmp.lt.s32.totalorder %s674, 5
        %s676 = scalar_select %p675, %s674, 5
        %s677 = smul.addr %s676, 8
        %s678 = scalar_lea.vmem %s6, %s677
      $region60: #{gcn_forward.1} parent=55 // pred_fallthru
        _
    $region56: #{gcn_forward.1} parent=5 // pred_fallthru
      _
  $region6: #{gcn_forward.1} parent=0 // loop_footer
    %s16 = sadd.s32 1, %s12
  $region7: #{gcn_forward.1} parent=0 // loop_footer_branch
    %11 = sbr.rel target = $region3
  $region8: #{gcn_forward.1} parent=0 // loop_exit
    _

</llo_original>
